<compile_context>
chip_gen: v5e
topology: v5e:2x2
jax: 0.10.0
libtpu: 0.0.40
codegen_flags: <defaults>
</compile_context>

<pallas_src>
import functools

import jax
import jax.numpy as jnp
from jax.experimental import pallas as pl
from jax.experimental.pallas import tpu as pltpu

LANE = 128
SUBLANE_PACK = 32                     # row granularity (covers bf16/int8 packing)
TILE_BYTES = 4 * 1024 * 1024          # per input, per pipeline buffer
VMEM_LIMIT = 32 * 1024 * 1024         # 16 MiB of double-buffered tiles + headroom
NUM_SHARDS = 2                        # leading "parallel" axis (2 TCs on v7x)


def _round_up(x, m):
    return (x + m - 1) // m * m


def _eq_int32(a, b, direct):
    # torch .long() truncates toward zero; the int32 cast matches that for
    # values representable in int32 and is a no-op for integer inputs.
    # TODO(synk): true int64 .long() semantics (|x| >= 2^31, NaN/Inf) diverge.
    if direct:
        return (a == b).astype(jnp.int32)
    return (a.astype(jnp.int32) == b.astype(jnp.int32)).astype(jnp.int32)


def _accuracy_kernel(a_ref, b_ref, out_ref, *, rows, tile_rows, num_blocks,
                     blocks_per_shard, need_mask, direct):
    p = pl.program_id(0)              # shard (parallel axis; 2 TCs on v7x)
    i = pl.program_id(1)              # streaming axis within the shard
    gb = p * blocks_per_shard + i     # global (unclamped) row-block index

    @pl.when(i == 0)
    def _():
        out_ref[...] = jnp.zeros_like(out_ref)

    def partial_sum(masked):
        eq = _eq_int32(a_ref[...], b_ref[...], direct)
        if masked:
            # Rows processed here are fully lane-aligned, so the bound is a
            # pure row compare: valid rows of this block = rows - gb*tile_rows
            # (<= 0 for shard-overshoot blocks -> contributes zero).
            r = jax.lax.broadcasted_iota(jnp.int32, (tile_rows, 1), 0)
            eq = jnp.where(r < rows - gb * tile_rows, eq, 0)
        # (tile_rows,128) -> (8,128): stacked-vreg VPU adds only; the single
        # cross-lane reduce is deferred to the (tiny) wrapper epilogue.
        return jnp.sum(eq.reshape(tile_rows // 8, 8, LANE), axis=0)

    if need_mask:
        @pl.when(gb < num_blocks - 1)
        def _():
            out_ref[...] += partial_sum(False)

        @pl.when(gb >= num_blocks - 1)
        def _():
            out_ref[...] += partial_sum(True)
    else:
        out_ref[...] += partial_sum(False)


def mock_accuracy(inp, tgt):
    assert inp.shape == tgt.shape
    numel = int(inp.size)

    # Integer inputs: compare directly in native dtype (no per-vreg casts).
    direct = (inp.dtype == tgt.dtype) and jnp.issubdtype(inp.dtype, jnp.integer)

    flat_i = inp.reshape(-1)
    flat_t = tgt.reshape(-1)

    rows = numel // LANE
    rem = numel - rows * LANE

    # <128-element tail handled with a trivial XLA compare-sum (no jnp.pad /
    # full-array realignment copy).
    if rem:
        tail = _eq_int32(flat_i[rows * LANE:], flat_t[rows * LANE:], direct)
        count = jnp.sum(tail, dtype=jnp.int32)
    else:
        count = jnp.int32(0)

    if rows > 0:
        if rem:
            a2 = flat_i[: rows * LANE].reshape(rows, LANE)
            b2 = flat_t[: rows * LANE].reshape(rows, LANE)
        else:
            a2 = flat_i.reshape(rows, LANE)   # lane-aligned: free reshape
            b2 = flat_t.reshape(rows, LANE)

        # Dtype-aware tile sizing from a byte budget (f32 -> 8192 rows,
        # bf16 -> 16384, int8 -> 32768); clamp for small inputs.
        itemsize = max(a2.dtype.itemsize, b2.dtype.itemsize)
        tile_rows = min(TILE_BYTES // (LANE * itemsize),
                        _round_up(rows, SUBLANE_PACK))

        num_blocks = pl.cdiv(rows, tile_rows)
        num_shards = NUM_SHARDS if num_blocks >= NUM_SHARDS else 1
        blocks_per_shard = pl.cdiv(num_blocks, num_shards)
        overshoot = num_shards * blocks_per_shard != num_blocks
        need_mask = overshoot or (num_blocks * tile_rows != rows)

        if overshoot:
            # Shard-overshoot steps re-read the last real block (clamped) and
            # are fully masked out in-kernel.
            def in_map(p, i):
                return (jnp.minimum(p * blocks_per_shard + i, num_blocks - 1), 0)
        else:
            def in_map(p, i):
                return (p * blocks_per_shard + i, 0)

        in_spec = pl.BlockSpec((tile_rows, LANE), in_map)

        cost = pl.CostEstimate(
            flops=2 * rows * LANE,
            transcendentals=0,
            bytes_accessed=rows * LANE * (a2.dtype.itemsize + b2.dtype.itemsize)
            + num_shards * 8 * LANE * 4)

        partials = pl.pallas_call(
            functools.partial(
                _accuracy_kernel, rows=rows, tile_rows=tile_rows,
                num_blocks=num_blocks, blocks_per_shard=blocks_per_shard,
                need_mask=need_mask, direct=direct),
            out_shape=jax.ShapeDtypeStruct((num_shards, 8, LANE), jnp.int32),
            grid=(num_shards, blocks_per_shard),
            in_specs=[in_spec, in_spec],
            out_specs=pl.BlockSpec((None, 8, LANE), lambda p, i: (p, 0, 0)),
            compiler_params=pltpu.CompilerParams(
                dimension_semantics=("parallel", "arbitrary"),
                vmem_limit_bytes=VMEM_LIMIT),
            cost_estimate=cost,
        )(a2, b2)

        count = count + jnp.sum(partials, dtype=jnp.int32)

    # Exact integer match count -> float normalize (torch: sum().float()/numel).
    return count.astype(jnp.float32) / jnp.float32(numel)


def _ref_accuracy(inp, tgt):
    eq = inp.astype(jnp.int32) == tgt.astype(jnp.int32)
    return eq.sum().astype(jnp.float32) / inp.size


if __name__ == "__main__":
    key = jax.random.PRNGKey(0)
    ks = jax.random.split(key, 8)

    # 1) Required small case: classification-style float predictions/targets.
    shape = (2, 4, 16, 16)
    inp = jax.random.randint(ks[0], shape, 0, 5).astype(jnp.float32)
    tgt = jax.random.randint(ks[1], shape, 0, 5).astype(jnp.float32)
    acc = jax.block_until_ready(mock_accuracy(inp, tgt))
    ref = _ref_accuracy(inp, tgt)
    assert jnp.allclose(acc, ref, atol=1e-6), (acc, ref)

    # 2) Non-lane-aligned integer inputs: wrapper tail path + direct compare.
    shape2 = (3, 5, 7, 11)
    inp2 = jax.random.randint(ks[2], shape2, 0, 4)
    tgt2 = jax.random.randint(ks[3], shape2, 0, 4)
    acc2 = jax.block_until_ready(mock_accuracy(inp2, tgt2))
    ref2 = _ref_accuracy(inp2, tgt2)
    assert jnp.allclose(acc2, ref2, atol=1e-6), (acc2, ref2)

    # 3) bf16 streaming, single large block with a partial-row mask.
    shape3 = (1200, 640)
    inp3 = jax.random.randint(ks[4], shape3, 0, 3).astype(jnp.bfloat16)
    tgt3 = jax.random.randint(ks[5], shape3, 0, 3).astype(jnp.bfloat16)
    acc3 = jax.block_until_ready(mock_accuracy(inp3, tgt3))
    ref3 = _ref_accuracy(inp3, tgt3)
    assert jnp.allclose(acc3, ref3, atol=1e-6), (acc3, ref3)

    # 4) Multi-block f32: 2-shard parallel axis, shard overshoot (clamped
    #    index_map + fully-masked extra block) and a partial last block.
    shape4 = (5000, 512)
    inp4 = jax.random.randint(ks[6], shape4, 0, 6).astype(jnp.float32)
    tgt4 = jax.random.randint(ks[7], shape4, 0, 6).astype(jnp.float32)
    acc4 = jax.block_until_ready(mock_accuracy(inp4, tgt4))
    ref4 = _ref_accuracy(inp4, tgt4)
    assert jnp.allclose(acc4, ref4, atol=1e-6), (acc4, ref4)

    print("KERNEL_OK")
</pallas_src>

<mosaic_0001>
module attributes {stable_mosaic.version = 11 : i64} {
  func.func @_accuracy_kernel(%arg0: i32, %arg1: i32, %arg2: memref<32x128xf32, #tpu.memory_space<vmem>>, %arg3: memref<32x128xf32, #tpu.memory_space<vmem>>, %arg4: memref<1x8x128xi32, #tpu.memory_space<vmem>>) attributes {dimension_semantics = [#tpu.dimension_semantics<parallel>, #tpu.dimension_semantics<arbitrary>], iteration_bounds = array<i64: 1, 1>, scalar_prefetch = 0 : i64, scratch_operands = 0 : i64, tpu.core_type = #tpu.core_type<tc>, window_params = [{transform_indices = @transform_0, window_bounds = array<i64: 32, 128>}, {transform_indices = @transform_1, window_bounds = array<i64: 32, 128>}, {transform_indices = @transform_2, window_bounds = array<i64: 1, 8, 128>}]} {
    %c1_i32 = arith.constant 1 : i32
    %0 = arith.muli %arg0, %c1_i32 : i32
    %1 = arith.addi %0, %arg1 : i32
    %c0_i32 = arith.constant 0 : i32
    %2 = arith.cmpi eq, %arg1, %c0_i32 : i32
    %3 = arith.extui %2 : i1 to i32
    %c0_i32_0 = arith.constant 0 : i32
    %4 = arith.cmpi ne, %3, %c0_i32_0 : i32
    scf.if %4 {
      %c0_i32_5 = arith.constant 0 : i32
      %11 = vector.broadcast %c0_i32_5 : i32 to vector<8x128xi32>
      %c0 = arith.constant 0 : index
      %c0_6 = arith.constant 0 : index
      %c0_7 = arith.constant 0 : index
      %12 = vector.load %arg4[%c0, %c0_6, %c0_7] : memref<1x8x128xi32, #tpu.memory_space<vmem>>, vector<1x8x128xi32>
      %13 = vector.shape_cast %12 : vector<1x8x128xi32> to vector<8x128xi32>
      %14 = vector.shape_cast %11 : vector<8x128xi32> to vector<1x8x128xi32>
      tpu.vector_store %arg4[%c0, %c0_6, %c0_7], %14 {strides = array<i32>} : memref<1x8x128xi32, #tpu.memory_space<vmem>>, vector<1x8x128xi32>,
    } else {
    }
    %c0_i32_1 = arith.constant 0 : i32
    %5 = arith.cmpi slt, %1, %c0_i32_1 : i32
    %6 = arith.extui %5 : i1 to i32
    %c0_i32_2 = arith.constant 0 : i32
    %7 = arith.cmpi ne, %6, %c0_i32_2 : i32
    scf.if %7 {
      %c0 = arith.constant 0 : index
      %c0_5 = arith.constant 0 : index
      %c0_6 = arith.constant 0 : index
      %11 = vector.load %arg4[%c0, %c0_5, %c0_6] : memref<1x8x128xi32, #tpu.memory_space<vmem>>, vector<1x8x128xi32>
      %12 = vector.shape_cast %11 : vector<1x8x128xi32> to vector<8x128xi32>
      %c0_7 = arith.constant 0 : index
      %c0_8 = arith.constant 0 : index
      %13 = vector.load %arg2[%c0_7, %c0_8] : memref<32x128xf32, #tpu.memory_space<vmem>>, vector<32x128xf32>
      %c0_9 = arith.constant 0 : index
      %c0_10 = arith.constant 0 : index
      %14 = vector.load %arg3[%c0_9, %c0_10] : memref<32x128xf32, #tpu.memory_space<vmem>>, vector<32x128xf32>
      %15 = arith.fptosi %13 : vector<32x128xf32> to vector<32x128xi32>
      %16 = arith.fptosi %14 : vector<32x128xf32> to vector<32x128xi32>
      %17 = arith.cmpi eq, %15, %16 : vector<32x128xi32>
      %18 = arith.extui %17 : vector<32x128xi1> to vector<32x128xi32>
      %19 = vector.shape_cast %18 : vector<32x128xi32> to vector<4x8x128xi32>
      %cst = arith.constant dense<0> : vector<8x128xi32>
      %20 = vector.multi_reduction <add>, %19, %cst [0] : vector<4x8x128xi32> to vector<8x128xi32>
      %21 = arith.addi %12, %20 : vector<8x128xi32>
      %c0_11 = arith.constant 0 : index
      %c0_12 = arith.constant 0 : index
      %c0_13 = arith.constant 0 : index
      %22 = vector.load %arg4[%c0_11, %c0_12, %c0_13] : memref<1x8x128xi32, #tpu.memory_space<vmem>>, vector<1x8x128xi32>
      %23 = vector.shape_cast %22 : vector<1x8x128xi32> to vector<8x128xi32>
      %24 = vector.shape_cast %21 : vector<8x128xi32> to vector<1x8x128xi32>
      tpu.vector_store %arg4[%c0_11, %c0_12, %c0_13], %24 {strides = array<i32>} : memref<1x8x128xi32, #tpu.memory_space<vmem>>, vector<1x8x128xi32>,
    } else {
    }
    %c0_i32_3 = arith.constant 0 : i32
    %8 = arith.cmpi sge, %1, %c0_i32_3 : i32
    %9 = arith.extui %8 : i1 to i32
    %c0_i32_4 = arith.constant 0 : i32
    %10 = arith.cmpi ne, %9, %c0_i32_4 : i32
    scf.if %10 {
      %c0 = arith.constant 0 : index
      %c0_5 = arith.constant 0 : index
      %c0_6 = arith.constant 0 : index
      %11 = vector.load %arg4[%c0, %c0_5, %c0_6] : memref<1x8x128xi32, #tpu.memory_space<vmem>>, vector<1x8x128xi32>
      %12 = vector.shape_cast %11 : vector<1x8x128xi32> to vector<8x128xi32>
      %c0_7 = arith.constant 0 : index
      %c0_8 = arith.constant 0 : index
      %13 = vector.load %arg2[%c0_7, %c0_8] : memref<32x128xf32, #tpu.memory_space<vmem>>, vector<32x128xf32>
      %c0_9 = arith.constant 0 : index
      %c0_10 = arith.constant 0 : index
      %14 = vector.load %arg3[%c0_9, %c0_10] : memref<32x128xf32, #tpu.memory_space<vmem>>, vector<32x128xf32>
      %15 = arith.fptosi %13 : vector<32x128xf32> to vector<32x128xi32>
      %16 = arith.fptosi %14 : vector<32x128xf32> to vector<32x128xi32>
      %17 = arith.cmpi eq, %15, %16 : vector<32x128xi32>
      %18 = arith.extui %17 : vector<32x128xi1> to vector<32x128xi32>
      %19 = tpu.iota {dimensions = array<i32: 0>} : vector<32x1xi32>
      %c32_i32 = arith.constant 32 : i32
      %20 = arith.muli %1, %c32_i32 : i32
      %c16_i32 = arith.constant 16 : i32
      %21 = arith.subi %c16_i32, %20 : i32
      %22 = vector.broadcast %21 : i32 to vector<32x1xi32>
      %23 = arith.cmpi slt, %19, %22 : vector<32x1xi32>
      %c0_i32_11 = arith.constant 0 : i32
      %24 = vector.shape_cast %23 : vector<32x1xi1> to vector<32x1xi1>
      %25 = vector.broadcast %24 : vector<32x1xi1> to vector<32x128xi1>
      %26 = vector.broadcast %c0_i32_11 : i32 to vector<32x128xi32>
      %27 = arith.select %25, %18, %26 : vector<32x128xi1>, vector<32x128xi32>
      %28 = vector.shape_cast %27 : vector<32x128xi32> to vector<4x8x128xi32>
      %cst = arith.constant dense<0> : vector<8x128xi32>
      %29 = vector.multi_reduction <add>, %28, %cst [0] : vector<4x8x128xi32> to vector<8x128xi32>
      %30 = arith.addi %12, %29 : vector<8x128xi32>
      %c0_12 = arith.constant 0 : index
      %c0_13 = arith.constant 0 : index
      %c0_14 = arith.constant 0 : index
      %31 = vector.load %arg4[%c0_12, %c0_13, %c0_14] : memref<1x8x128xi32, #tpu.memory_space<vmem>>, vector<1x8x128xi32>
      %32 = vector.shape_cast %31 : vector<1x8x128xi32> to vector<8x128xi32>
      %33 = vector.shape_cast %30 : vector<8x128xi32> to vector<1x8x128xi32>
      tpu.vector_store %arg4[%c0_12, %c0_13, %c0_14], %33 {strides = array<i32>} : memref<1x8x128xi32, #tpu.memory_space<vmem>>, vector<1x8x128xi32>,
    } else {
    }
    return
  }
  func.func @transform_0(%arg0: i32, %arg1: i32) -> (i32, i32) {
    %c1_i32 = arith.constant 1 : i32
    %0 = arith.muli %arg0, %c1_i32 : i32
    %1 = arith.addi %0, %arg1 : i32
    %c0_i32 = arith.constant 0 : i32
    %c0_i32_0 = arith.constant 0 : i32
    return %1, %c0_i32 : i32, i32
  }
  func.func @transform_1(%arg0: i32, %arg1: i32) -> (i32, i32) {
    %c1_i32 = arith.constant 1 : i32
    %0 = arith.muli %arg0, %c1_i32 : i32
    %1 = arith.addi %0, %arg1 : i32
    %c0_i32 = arith.constant 0 : i32
    %c0_i32_0 = arith.constant 0 : i32
    return %1, %c0_i32 : i32, i32
  }
  func.func @transform_2(%arg0: i32, %arg1: i32) -> (i32, i32, i32) {
    %c0_i32 = arith.constant 0 : i32
    %c0_i32_0 = arith.constant 0 : i32
    %c0_i32_1 = arith.constant 0 : i32
    return %arg0, %c0_i32, %c0_i32_0 : i32, i32, i32
  }
}

</mosaic_0001>

<llo_original>
// kernel: tpu_custom_call.1
$region0: #{tpu_custom_call.1}
  #allocation0 [shape = 'u32[]', space=smem, size = 0x4, offset = 0x4, fixed_abs, tag = 'smem constant byte address 0x4 - core index']
  #allocation1 [shape = 'u32[72,128]{1,0:T(1,128)}', space=vmem, size = 0x9000, scoped, tag = 'internal scratch']
  %s0 = inlined_call_operand.hbm [shape: f32[16,128], index: 0, kind: input, shape index: {}]
  %s1 = inlined_call_operand.hbm [shape: f32[16,128], index: 1, kind: input, shape index: {}]
  %s2 = inlined_call_operand.hbm [shape: s32[1,8,128], index: 2, kind: output, shape index: {}]
  %s3 = sld [smem:[#allocation0]]
  $region38: #{tpu_custom_call.1} parent=0
    _
  %s5 = ssub.s32 1, %s3
  %s6 = scalar_select 0, %s5, %s3
  $region1: #{tpu_custom_call.1} parent=0
    #allocation2 [shape = 'u8[16384]{0}', space=vmem, size = 0x4000, scoped, tag = 'input window, operand 0, single buffered']
    #allocation3 [shape = 's32[1]{0}', space=sflag, size = 0x4, scoped, tag = 'scoped memory for tpu_custom_call.1']
    #allocation4 [shape = 's32[1]{0}', space=sflag, size = 0x4, scoped, tag = 'scoped memory for tpu_custom_call.1']
    #allocation5 [shape = 'u8[16384]{0}', space=vmem, size = 0x4000, scoped, tag = 'input window, operand 1, single buffered']
    #allocation6 [shape = 's32[1]{0}', space=sflag, size = 0x4, scoped, tag = 'scoped memory for tpu_custom_call.1']
    #allocation7 [shape = 'u8[4096]{0}', space=vmem, size = 0x1000, scoped, tag = 'output window, operand 0, single buffered']
    %7 = vsyncpa [#allocation3], 0
    %8 = vsyncpa [#allocation6], 0
    %9 = vsyncpa [#allocation4], 0
    // Predicated region
    $region2: #{tpu_custom_call.1} parent=1 // pred_check
      _
    $region3: #{tpu_custom_call.1} parent=1 // pred_check_branch
      %11 = sbr.rel (0) target = $region5
    $region4: #{tpu_custom_call.1} parent=1 // pred_region
      %s12 = sadd.s32 0, 0
      %s13 = smul.u32 4, %s12
      %s14 = ssub.s32 2, %s13
      %s15 = smul.u32 8, %s14
      %s16 = ssub.s32 32, %s15
      %s17 = sshll.u32 %s16, 4
      %18 = vsyncadd [#allocation3], %s17
      %p19 = scmp.ne.s32.totalorder 0, %s15
      %s20 = smul.addr %s13, 8
      %s21 = scalar_lea.hbm %s0, %s20
      %s22 = smul.u32 8, %s14
      %s23 = sshll.u32 %s21, 4
      %s24 = int_to_ptr.hbm [resolvable:$true] %s23
      %s25 = sshll.u32 [#allocation2], 4
      %s26 = int_to_ptr.vmem [resolvable:$true] %s25
      %s27 = sshll.u32 %s22, 4
      %31 = dma.hbm_to_vmem [thread:$0]  (%p19), %s24, %s27, %s26, [#allocation3], 128, 128, 8
    $region5: #{tpu_custom_call.1} parent=1 // pred_fallthru
      _
    // Predicated region
    $region6: #{tpu_custom_call.1} parent=1 // pred_check
      _
    $region7: #{tpu_custom_call.1} parent=1 // pred_check_branch
      %33 = sbr.rel (0) target = $region9
    $region8: #{tpu_custom_call.1} parent=1 // pred_region
      %s34 = sadd.s32 0, 0
      %s35 = smul.u32 4, %s34
      %s36 = ssub.s32 2, %s35
      %s37 = smul.u32 8, %s36
      %s38 = ssub.s32 32, %s37
      %s39 = sshll.u32 %s38, 4
      %40 = vsyncadd [#allocation6], %s39
      %p41 = scmp.ne.s32.totalorder 0, %s37
      %s42 = smul.addr %s35, 8
      %s43 = scalar_lea.hbm %s1, %s42
      %s44 = smul.u32 8, %s36
      %s45 = sshll.u32 %s43, 4
      %s46 = int_to_ptr.hbm [resolvable:$true] %s45
      %s47 = sshll.u32 [#allocation5], 4
      %s48 = int_to_ptr.vmem [resolvable:$true] %s47
      %s49 = sshll.u32 %s44, 4
      %53 = dma.hbm_to_vmem [thread:$0]  (%p41), %s46, %s49, %s48, [#allocation6], 128, 128, 8
    $region9: #{tpu_custom_call.1} parent=1 // pred_fallthru
      _
    // Predicated region
    $region10: #{tpu_custom_call.1} parent=1 // pred_check
      _
    $region11: #{tpu_custom_call.1} parent=1 // pred_check_branch
      %55 = sbr.rel (0) target = $region13
    $region12: #{tpu_custom_call.1} parent=1 // pred_region
      %57 = dma.done [#allocation3], 512
    $region13: #{tpu_custom_call.1} parent=1 // pred_fallthru
      _
    // Predicated region
    $region14: #{tpu_custom_call.1} parent=1 // pred_check
      _
    $region15: #{tpu_custom_call.1} parent=1 // pred_check_branch
      %59 = sbr.rel (0) target = $region17
    $region16: #{tpu_custom_call.1} parent=1 // pred_region
      %61 = dma.done [#allocation6], 512
    $region17: #{tpu_custom_call.1} parent=1 // pred_fallthru
      _
    %s62 = sadd.s32 0, 0
    %s63 = smul.u32 4, %s62
    %s64 = ssub.s32 2, %s63
    %s65 = smul.u32 8, %s64
    %s66 = sadd.s32 0, 0
    %s67 = smul.u32 4, %s66
    %s68 = ssub.s32 2, %s67
    %s69 = smul.u32 8, %s68
    %s70 = sadd.s32 0, 0
    %p71 = scmp.eq.s32.totalorder 0, 0
    // Predicated region
    $region18: #{tpu_custom_call.1} parent=1 // pred_check
      %p72 = pneg %p71
    $region19: #{tpu_custom_call.1} parent=1 // pred_check_branch
      %74 = sbr.rel (%p72) target = $region21
    $region20: #{tpu_custom_call.1} parent=1 // pred_region
      %75 = vst [vmem:[#allocation7] sm:$0xff] 0
    $region21: #{tpu_custom_call.1} parent=1 // pred_fallthru
      _
    %p76 = scmp.lt.s32.totalorder %s70, 0
    // Predicated region
    $region22: #{tpu_custom_call.1} parent=1 // pred_check
      %p77 = pneg %p76
    $region23: #{tpu_custom_call.1} parent=1 // pred_check_branch
      %79 = sbr.rel (%p77) target = $region25
    $region24: #{tpu_custom_call.1} parent=1 // pred_region
      %v80 = vld [vmem:[#allocation7] sm:$0xff]
      %v81 = vld [vmem:[#allocation2] sm:$0xff]
      %v82 = vld [vmem:[#allocation2 + $0x8] sm:$0xff]
      %v83 = vld [vmem:[#allocation2 + $0x10] sm:$0xff]
      %v84 = vld [vmem:[#allocation2 + $0x18] sm:$0xff]
      %v85 = vld [vmem:[#allocation5] sm:$0xff]
      %v86 = vld [vmem:[#allocation5 + $0x8] sm:$0xff]
      %v87 = vld [vmem:[#allocation5 + $0x10] sm:$0xff]
      %v88 = vld [vmem:[#allocation5 + $0x18] sm:$0xff]
      %v89 = vcvt.f32.s32.to.zero.pseudo %v81
      %v90 = vcvt.f32.s32.to.zero.pseudo %v82
      %v91 = vcvt.f32.s32.to.zero.pseudo %v83
      %v92 = vcvt.f32.s32.to.zero.pseudo %v84
      %v93 = vcvt.f32.s32.to.zero.pseudo %v85
      %v94 = vcvt.f32.s32.to.zero.pseudo %v86
      %v95 = vcvt.f32.s32.to.zero.pseudo %v87
      %v96 = vcvt.f32.s32.to.zero.pseudo %v88
      %vm97 = vcmp.eq.s32.totalorder %v89, %v93
      %vm98 = vcmp.eq.s32.totalorder %v90, %v94
      %vm99 = vcmp.eq.s32.totalorder %v91, %v95
      %vm100 = vcmp.eq.s32.totalorder %v92, %v96
      %v101 = vsel %vm97, 1, 0
      %v102 = vsel %vm98, 1, 0
      %v103 = vsel %vm99, 1, 0
      %v104 = vsel %vm100, 1, 0
      %v105 = vadd.s32 %v101, %v102
      %v106 = vadd.s32 %v103, %v104
      %v107 = vadd.s32 %v105, %v106
      %v108 = vadd.s32 %v80, %v107
      %109 = vst [vmem:[#allocation7] sm:$0xff] %v108
    $region25: #{tpu_custom_call.1} parent=1 // pred_fallthru
      _
    %p110 = scmp.ge.s32.totalorder %s70, 0
    // Predicated region
    $region26: #{tpu_custom_call.1} parent=1 // pred_check
      %p111 = pneg %p110
    $region27: #{tpu_custom_call.1} parent=1 // pred_check_branch
      %113 = sbr.rel (%p111) target = $region29
    $region28: #{tpu_custom_call.1} parent=1 // pred_region
      %v114 = vld [vmem:[#allocation7] sm:$0xff]
      %v115 = vld [vmem:[#allocation2] sm:$0xff]
      %v116 = vld [vmem:[#allocation2 + $0x8] sm:$0xff]
      %v117 = vld [vmem:[#allocation2 + $0x10] sm:$0xff]
      %v118 = vld [vmem:[#allocation2 + $0x18] sm:$0xff]
      %v119 = vld [vmem:[#allocation5] sm:$0xff]
      %v120 = vld [vmem:[#allocation5 + $0x8] sm:$0xff]
      %v121 = vld [vmem:[#allocation5 + $0x10] sm:$0xff]
      %v122 = vld [vmem:[#allocation5 + $0x18] sm:$0xff]
      %v123 = vcvt.f32.s32.to.zero.pseudo %v115
      %v124 = vcvt.f32.s32.to.zero.pseudo %v116
      %v125 = vcvt.f32.s32.to.zero.pseudo %v117
      %v126 = vcvt.f32.s32.to.zero.pseudo %v118
      %v127 = vcvt.f32.s32.to.zero.pseudo %v119
      %v128 = vcvt.f32.s32.to.zero.pseudo %v120
      %v129 = vcvt.f32.s32.to.zero.pseudo %v121
      %v130 = vcvt.f32.s32.to.zero.pseudo %v122
      %vm131 = vcmp.eq.s32.totalorder %v123, %v127
      %vm132 = vcmp.eq.s32.totalorder %v124, %v128
      %vm133 = vcmp.eq.s32.totalorder %v125, %v129
      %vm134 = vcmp.eq.s32.totalorder %v126, %v130
      %v135 = vsel %vm131, 1, 0
      %v136 = vsel %vm132, 1, 0
      %v137 = vsel %vm133, 1, 0
      %v138 = vsel %vm134, 1, 0
      %v139 = vlaneseq
      %v140 = vshrl.u32 %v139, 7
      %v141 = vadd.s32 %v140, 8
      %v142 = vadd.s32 %v140, 16
      %v143 = vadd.s32 %v140, 24
      %s144 = smul.u32 %s70, 32
      %s145 = ssub.s32 16, %s144
      %v146 = vstv %s145
      %vm147 = vcmp.lt.s32.totalorder %v140, %v146
      %vm148 = vcmp.lt.s32.totalorder %v141, %v146
      %vm149 = vcmp.lt.s32.totalorder %v142, %v146
      %vm150 = vcmp.lt.s32.totalorder %v143, %v146
      %v151 = vsel %vm147, 1, 0
      %v152 = vsel %vm148, 1, 0
      %v153 = vsel %vm149, 1, 0
      %v154 = vsel %vm150, 1, 0
      %vm155 = vcmp.eq.s32.totalorder %v151, 1
      %vm156 = vcmp.eq.s32.totalorder %v152, 1
      %vm157 = vcmp.eq.s32.totalorder %v153, 1
      %vm158 = vcmp.eq.s32.totalorder %v154, 1
      %v159 = vsel %vm155, %v135, 0
      %v160 = vsel %vm156, %v136, 0
      %v161 = vsel %vm157, %v137, 0
      %v162 = vsel %vm158, %v138, 0
      %v163 = vadd.s32 %v159, %v160
      %v164 = vadd.s32 %v161, %v162
      %v165 = vadd.s32 %v163, %v164
      %v166 = vadd.s32 %v114, %v165
      %167 = vst [vmem:[#allocation7] sm:$0xff] %v166
    $region29: #{tpu_custom_call.1} parent=1 // pred_fallthru
      _
    // Predicated region
    $region30: #{tpu_custom_call.1} parent=1 // pred_check
      _
    $region31: #{tpu_custom_call.1} parent=1 // pred_check_branch
      %169 = sbr.rel (0) target = $region33
    $region32: #{tpu_custom_call.1} parent=1 // pred_region
      %171 = vsyncadd [#allocation4], 0
      %s173 = sshll.u32 [#allocation7], 4
      %s174 = int_to_ptr.vmem [resolvable:$true] %s173
      %s175 = sshll.u32 %s2, 4
      %s176 = int_to_ptr.hbm [resolvable:$true] %s175
      %178 = dma.vmem_to_hbm [thread:$0]  %s174, 128, %s176, [#allocation4]
    $region33: #{tpu_custom_call.1} parent=1 // pred_fallthru
      _
    // Predicated region
    $region34: #{tpu_custom_call.1} parent=1 // pred_check
      _
    $region35: #{tpu_custom_call.1} parent=1 // pred_check_branch
      %180 = sbr.rel (0) target = $region37
    $region36: #{tpu_custom_call.1} parent=1 // pred_region
      %182 = dma.done [#allocation4], 128
    $region37: #{tpu_custom_call.1} parent=1 // pred_fallthru
      _
    %183 = vsyncpa [#allocation3], 1
    %184 = vsyncpa [#allocation6], 1
    %185 = vsyncpa [#allocation4], 1

</llo_original>
